<compile_context>
chip_gen: v7x
topology: tpu7x:2x2x1
jax: 0.10.0
libtpu: 0.0.40
codegen_flags: <defaults>
</compile_context>

<pallas_src>
import functools
import math

import jax
import jax.numpy as jnp
from jax.experimental import pallas as pl
from jax.experimental.pallas import tpu as pltpu


def _round_up(x, m):
    return ((x + m - 1) // m) * m


# ---------------------------------------------------------------------------
# Kernel 1: fused QKV projection (runs once over the sequence).
# ---------------------------------------------------------------------------
def _qkv_projection_kernel(x_ref, w_ref, qkv_ref):
    # One matmul with N = 3*d_out_p lanes; f32 accumulation on the MXU, result stored in the
    # attention compute dtype (bf16 by default) for full-rate attention matmuls downstream.
    qkv_ref[...] = jnp.dot(
        x_ref[...], w_ref[...], preferred_element_type=jnp.float32
    ).astype(qkv_ref.dtype)


# ---------------------------------------------------------------------------
# Kernel 2: flash-style tiled attention over the precomputed Q/K/V.
# ---------------------------------------------------------------------------
def _flash_attention_kernel(q_ref, k_ref, v_ref, o_ref,
                            m_sc, l_sc, acc_sc,
                            *, seq_len, block_k, mask_padding, approx_reciprocal):
    kv = pl.program_id(1)

    @pl.when(kv == 0)
    def _init():
        m_sc[...] = jnp.full_like(m_sc, -jnp.inf)
        l_sc[...] = jnp.zeros_like(l_sc)
        acc_sc[...] = jnp.zeros_like(acc_sc)

    # scores = Q @ K^T : contraction over the LAST dim of both operands (no materialized
    # transpose of K); bf16 operands at full MXU rate, f32 accumulation.  Q is pre-scaled.
    s = jax.lax.dot_general(q_ref[...], k_ref[...], (((1,), (1,)), ((), ())),
                            preferred_element_type=jnp.float32)          # (tq, tk) f32

    if mask_padding:
        # Padding mask (NOT causal): applied to the scores BEFORE the running max so padded
        # keys never inflate the max/denominator.  (1, block_k) additive bias; it is all
        # zeros on every kv tile except the ragged last one (cost: one vadd per s vreg).
        key_idx = kv * block_k + jax.lax.broadcasted_iota(jnp.int32, (1, s.shape[-1]), 1)
        s = s + jnp.where(key_idx < seq_len, 0.0, -1e30).astype(s.dtype)

    # Online (streaming) softmax.  m/l scratch is lane-dense (block_q, 128) with the per-row
    # value replicated across lanes so scratch stores stay full unmasked vregs.
    m_prev = m_sc[...]                                     # (tq, 128) replicated
    s_max = jnp.max(s, axis=-1, keepdims=True)             # (tq, 1)
    m_new = jnp.maximum(m_prev, s_max)                     # (tq, 128) replicated
    m_new_c = m_new[:, :1]                                 # (tq, 1)
    alpha_c = jnp.exp(m_prev[:, :1] - m_new_c)             # (tq, 1)
    p = jnp.exp(s - m_new_c)                               # (tq, tk) f32

    l_sc[...] = alpha_c * l_sc[...] + jnp.sum(p, axis=-1, keepdims=True)
    acc_sc[...] = alpha_c * acc_sc[...] + jnp.dot(
        p.astype(v_ref.dtype), v_ref[...], preferred_element_type=jnp.float32)
    m_sc[...] = m_new

    @pl.when(kv == pl.num_programs(1) - 1)
    def _finalize():
        # Deferred normalization: one reciprocal per query row (approx -> otherwise-idle EUP
        # slot) applied to the (tq, d_out) accumulator instead of dividing the (tq, tk) weights.
        inv_l = pl.reciprocal(l_sc[...], approx=approx_reciprocal)[:, :1]
        o_ref[...] = (acc_sc[...] * inv_l).astype(o_ref.dtype)


def self_attention_v1(x, w_query, w_key, w_value, *,
                      block_q=256, block_k=256,
                      compute_dtype=jnp.bfloat16,
                      approx_reciprocal=True):
    """SelfAttention_v1 forward: softmax((x Wq)(x Wk)^T / sqrt(d_out)) (x Wv)."""
    seq_len, d_in = x.shape
    d_out = w_query.shape[1]

    # Lane-dense, (8,128)-aligned padded feature sizes.
    d_in_p = _round_up(d_in, 128)
    d_out_p = _round_up(d_out, 128)

    # Clamp tiles to the (8-aligned) sequence length; require one block size to divide the
    # other so padding is bounded by max(block_q, block_k) (no lcm blow-up / dead grid steps).
    block_q = max(8, min(block_q, _round_up(seq_len, 8)))
    block_k = max(8, min(block_k, _round_up(seq_len, 8)))
    assert block_q % 8 == 0 and block_k % 8 == 0
    assert block_q % block_k == 0 or block_k % block_q == 0, (block_q, block_k)
    t_pad = _round_up(seq_len, max(block_q, block_k))

    scale = 1.0 / math.sqrt(d_out)  # scale uses the TRUE d_out, not the padded one

    x_p = jnp.pad(x, ((0, t_pad - seq_len), (0, d_in_p - d_in)))
    # Fused QKV weight; 1/sqrt(d_out) folded into W_query (cheapest place to apply it).
    pad_w = lambda w: jnp.pad(w, ((0, d_in_p - d_in), (0, d_out_p - d_out)))
    w_qkv = jnp.concatenate(
        [pad_w(w_query * scale), pad_w(w_key), pad_w(w_value)], axis=1)

    # ---- Kernel 1: project Q/K/V once (not once per query tile). ----
    block_r = max(block_q, block_k)
    qkv = pl.pallas_call(
        _qkv_projection_kernel,
        out_shape=jax.ShapeDtypeStruct((t_pad, 3 * d_out_p), compute_dtype),
        grid_spec=pltpu.PrefetchScalarGridSpec(
            num_scalar_prefetch=0,
            grid=(t_pad // block_r,),
            in_specs=[
                pl.BlockSpec((block_r, d_in_p), lambda r: (r, 0)),
                pl.BlockSpec((d_in_p, 3 * d_out_p), lambda r: (0, 0)),
            ],
            out_specs=pl.BlockSpec((block_r, 3 * d_out_p), lambda r: (r, 0)),
        ),
        compiler_params=pltpu.CompilerParams(dimension_semantics=("parallel",)),
    )(x_p, w_qkv)

    # ---- Kernel 2: flash attention over the precomputed Q/K/V. ----
    grid = (t_pad // block_q, t_pad // block_k)
    kernel = functools.partial(
        _flash_attention_kernel,
        seq_len=seq_len,
        block_k=block_k,
        mask_padding=(t_pad != seq_len),
        approx_reciprocal=approx_reciprocal,
    )

    out_p = pl.pallas_call(
        kernel,
        out_shape=jax.ShapeDtypeStruct((t_pad, d_out_p), x.dtype),
        grid_spec=pltpu.PrefetchScalarGridSpec(
            num_scalar_prefetch=0,
            grid=grid,
            in_specs=[
                # Three lane-aligned column windows into the same fused QKV array.
                pl.BlockSpec((block_q, d_out_p), lambda i, j: (i, 0)),   # Q (pre-scaled)
                pl.BlockSpec((block_k, d_out_p), lambda i, j: (j, 1)),   # K
                pl.BlockSpec((block_k, d_out_p), lambda i, j: (j, 2)),   # V
            ],
            out_specs=pl.BlockSpec((block_q, d_out_p), lambda i, j: (i, 0)),
            scratch_shapes=[
                pltpu.VMEM((block_q, 128), jnp.float32),      # running max (lane-replicated)
                pltpu.VMEM((block_q, 128), jnp.float32),      # running denom (lane-replicated)
                pltpu.VMEM((block_q, d_out_p), jnp.float32),  # un-normalized output accumulator
            ],
        ),
        compiler_params=pltpu.CompilerParams(
            # Query tiles independent -> "parallel" (megacore sharding on v7x; no-op on
            # single-TC v5e/v6e); kv axis carries online-softmax state -> "arbitrary".
            dimension_semantics=("parallel", "arbitrary"),
        ),
    )(qkv, qkv, qkv)

    return out_p[:seq_len, :d_out]


def reference(x, w_query, w_key, w_value):
    queries = x @ w_query
    keys = x @ w_key
    values = x @ w_value
    scores = queries @ keys.T
    weights = jax.nn.softmax(scores / jnp.sqrt(jnp.float32(keys.shape[-1])), axis=-1)
    return weights @ values


if __name__ == "__main__":
    # Same input as the PyTorch script: 6 tokens, d_in=3, d_out=2.
    inputs = jnp.array(
        [[0.43, 0.15, 0.89],
         [0.55, 0.87, 0.66],
         [0.57, 0.85, 0.64],
         [0.22, 0.58, 0.33],
         [0.77, 0.25, 0.10],
         [0.05, 0.80, 0.55]],
        dtype=jnp.float32,
    )
    d_in = inputs.shape[1]
    d_out = 2

    key = jax.random.PRNGKey(0)
    kq, kk, kv_key, kx = jax.random.split(key, 4)
    w_query = jax.random.uniform(kq, (d_in, d_out), dtype=jnp.float32)
    w_key = jax.random.uniform(kk, (d_in, d_out), dtype=jnp.float32)
    w_value = jax.random.uniform(kv_key, (d_in, d_out), dtype=jnp.float32)

    out = jax.block_until_ready(self_attention_v1(inputs, w_query, w_key, w_value))
    ref = reference(inputs, w_query, w_key, w_value)
    assert out.shape == (inputs.shape[0], d_out)
    # Tolerance allows for bf16 attention-matmul operands + approx reciprocal.
    assert jnp.allclose(out, ref, atol=2e-2, rtol=2e-2), (out, ref)

    # Larger, non-aligned shape.  block=128 forces a (2,2) grid (multi-tile online softmax)
    # and exercises the ragged-last-kv-tile padding mask on the bf16 path.
    k1, k2, k3, k4 = jax.random.split(kx, 4)
    x2 = 0.5 * jax.random.normal(k1, (200, 48), dtype=jnp.float32)
    w2q = 0.2 * jax.random.normal(k2, (48, 24), dtype=jnp.float32)
    w2k = 0.2 * jax.random.normal(k3, (48, 24), dtype=jnp.float32)
    w2v = 0.2 * jax.random.normal(k4, (48, 24), dtype=jnp.float32)
    ref2 = reference(x2, w2q, w2k, w2v)

    out2 = jax.block_until_ready(
        self_attention_v1(x2, w2q, w2k, w2v, block_q=128, block_k=128))
    assert out2.shape == (200, 24)
    assert jnp.allclose(out2, ref2, atol=3e-2, rtol=3e-2), float(jnp.max(jnp.abs(out2 - ref2)))

    # f32 compute path (single big tile, exact reciprocal): tighter accuracy check.
    out2f = jax.block_until_ready(self_attention_v1(
        x2, w2q, w2k, w2v, compute_dtype=jnp.float32, approx_reciprocal=False))
    assert jnp.allclose(out2f, ref2, atol=2e-2, rtol=2e-2), float(jnp.max(jnp.abs(out2f - ref2)))

    print("KERNEL_OK")
</pallas_src>

<mosaic_0001>
module attributes {stable_mosaic.version = 11 : i64} {
  func.func @_qkv_projection_kernel(%arg0: i32, %arg1: memref<8x128xf32, #tpu.memory_space<vmem>>, %arg2: memref<128x384xf32, #tpu.memory_space<vmem>>, %arg3: memref<8x384xbf16, #tpu.memory_space<vmem>>) attributes {dimension_semantics = [#tpu.dimension_semantics<parallel>], iteration_bounds = array<i64: 1>, scalar_prefetch = 0 : i64, scratch_operands = 0 : i64, tpu.core_type = #tpu.core_type<tc>, window_params = [{transform_indices = @transform_0, window_bounds = array<i64: 8, 128>}, {pipeline_mode = #tpu.pipeline_mode<synchronous>, transform_indices = @transform_1, window_bounds = array<i64: 128, 384>}, {transform_indices = @transform_2, window_bounds = array<i64: 8, 384>}]} {
    %c0 = arith.constant 0 : index
    %c0_0 = arith.constant 0 : index
    %0 = vector.load %arg1[%c0, %c0_0] : memref<8x128xf32, #tpu.memory_space<vmem>>, vector<8x128xf32>
    %c0_1 = arith.constant 0 : index
    %c0_2 = arith.constant 0 : index
    %1 = vector.load %arg2[%c0_1, %c0_2] : memref<128x384xf32, #tpu.memory_space<vmem>>, vector<128x384xf32>
    %cst = arith.constant dense<0.000000e+00> : vector<8x384xf32>
    %2 = tpu.matmul %0, %1, %cst {dimension_numbers = #tpu.dot_dimension_numbers<[1], [0], [0], [1], [0, 0, 1, 1], [], []>} : vector<8x128xf32>, vector<128x384xf32>, vector<8x384xf32> -> vector<8x384xf32>
    %3 = arith.truncf %2 : vector<8x384xf32> to vector<8x384xbf16>
    %c0_3 = arith.constant 0 : index
    %c0_4 = arith.constant 0 : index
    %4 = vector.load %arg3[%c0_3, %c0_4] : memref<8x384xbf16, #tpu.memory_space<vmem>>, vector<8x384xbf16>
    tpu.vector_store %arg3[%c0_3, %c0_4], %3 {strides = array<i32>} : memref<8x384xbf16, #tpu.memory_space<vmem>>, vector<8x384xbf16>,
    return
  }
  func.func @transform_0(%arg0: i32) -> (i32, i32) {
    %c0_i32 = arith.constant 0 : i32
    %c0_i32_0 = arith.constant 0 : i32
    return %arg0, %c0_i32 : i32, i32
  }
  func.func @transform_1(%arg0: i32) -> (i32, i32) {
    %c0_i32 = arith.constant 0 : i32
    %c0_i32_0 = arith.constant 0 : i32
    %c0_i32_1 = arith.constant 0 : i32
    return %c0_i32, %c0_i32_0 : i32, i32
  }
  func.func @transform_2(%arg0: i32) -> (i32, i32) {
    %c0_i32 = arith.constant 0 : i32
    %c0_i32_0 = arith.constant 0 : i32
    return %arg0, %c0_i32 : i32, i32
  }
}

</mosaic_0001>

<llo_original>
// kernel: tpu_custom_call.1
$region0: #{tpu_custom_call.1}
  #allocation0 [shape = 'u32[]', space=smem, size = 0x4, offset = 0x4, fixed_abs, tag = 'smem constant byte address 0x4 - core index']
  #allocation1 [shape = 'u32[144,128]{1,0:T(1,128)}', space=vmem, size = 0x12000, scoped, tag = 'internal scratch']
  %s0 = inlined_call_operand.hbm [shape: f32[8,128], index: 0, kind: input, shape index: {}]
  %s1 = inlined_call_operand.hbm [shape: f32[128,384], index: 1, kind: input, shape index: {}]
  %s2 = inlined_call_operand.hbm [shape: bf16[8,384], index: 2, kind: output, shape index: {}]
  %s3 = sld [smem:[#allocation0]]
  $region26: #{tpu_custom_call.1} parent=0
    _
  %s5 = ssub.s32 1, %s3
  %s6 = scalar_select 0, %s5, %s3
  $region1: #{tpu_custom_call.1} parent=0
    #allocation2 [shape = 'u8[4096]{0}', space=vmem, size = 0x1000, scoped, tag = 'input window, operand 0, single buffered']
    #allocation3 [shape = 's32[1]{0}', space=sflag, size = 0x4, scoped, tag = 'scoped memory for tpu_custom_call.1']
    #allocation4 [shape = 's32[1]{0}', space=sflag, size = 0x4, scoped, tag = 'scoped memory for tpu_custom_call.1']
    #allocation5 [shape = 'u8[196608]{0}', space=vmem, size = 0x30000, scoped, tag = 'input window, operand 1, single buffered']
    #allocation6 [shape = 's32[1]{0}', space=sflag, size = 0x4, scoped, tag = 'scoped memory for tpu_custom_call.1']
    #allocation7 [shape = 'u8[6144]{0}', space=vmem, size = 0x1800, scoped, tag = 'output window, operand 0, single buffered']
    %7 = vsyncpa [#allocation3], 0
    %8 = vsyncpa [#allocation6], 0
    %9 = vsyncpa [#allocation4], 0
    // Predicated region
    $region2: #{tpu_custom_call.1} parent=1 // pred_check
      _
    $region3: #{tpu_custom_call.1} parent=1 // pred_check_branch
      %11 = sbr.rel (0) target = $region5
    $region4: #{tpu_custom_call.1} parent=1 // pred_region
      %s13 = ssub.s32 128, 128
      %14 = vsyncadd [#allocation3], %s13
      %s16 = sshll.u32 [#allocation2], 4
      %s17 = int_to_ptr.vmem [resolvable:$true] %s16
      %19 = dma.hbm_to_vmem [thread:$0]  %s0, 128, %s17, [#allocation3]
    $region5: #{tpu_custom_call.1} parent=1 // pred_fallthru
      _
    // Predicated region
    $region6: #{tpu_custom_call.1} parent=1 // pred_check
      _
    $region7: #{tpu_custom_call.1} parent=1 // pred_check_branch
      %21 = sbr.rel (0) target = $region9
    $region8: #{tpu_custom_call.1} parent=1 // pred_region
      %s23 = ssub.s32 6144, 6144
      %24 = vsyncadd [#allocation6], %s23
      %s25 = sshll.u32 [#allocation5], 4
      %s26 = int_to_ptr.vmem [resolvable:$true] %s25
      %31 = dma.hbm_to_vmem [thread:$0]  %s1, 6144, %s26, [#allocation6], 384, 384, 24
    $region9: #{tpu_custom_call.1} parent=1 // pred_fallthru
      _
    // Predicated region
    $region10: #{tpu_custom_call.1} parent=1 // pred_check
      _
    $region11: #{tpu_custom_call.1} parent=1 // pred_check_branch
      %33 = sbr.rel (0) target = $region13
    $region12: #{tpu_custom_call.1} parent=1 // pred_region
      %34 = dma.done [#allocation3], 128
    $region13: #{tpu_custom_call.1} parent=1 // pred_fallthru
      _
    // Predicated region
    $region14: #{tpu_custom_call.1} parent=1 // pred_check
      _
    $region15: #{tpu_custom_call.1} parent=1 // pred_check_branch
      %36 = sbr.rel (0) target = $region17
    $region16: #{tpu_custom_call.1} parent=1 // pred_region
      %37 = dma.done [#allocation6], 6144
    $region17: #{tpu_custom_call.1} parent=1 // pred_fallthru
      _
    %v38 = vld [vmem:[#allocation2] sm:$0xff]
    %v39 = vld [vmem:[#allocation5] sm:$0xff]
    %v40 = vld [vmem:[#allocation5 + $0x8] sm:$0xff]
    %v41 = vld [vmem:[#allocation5 + $0x10] sm:$0xff]
    %v42 = vld [vmem:[#allocation5 + $0x18] sm:$0xff]
    %v43 = vld [vmem:[#allocation5 + $0x20] sm:$0xff]
    %v44 = vld [vmem:[#allocation5 + $0x28] sm:$0xff]
    %v45 = vld [vmem:[#allocation5 + $0x30] sm:$0xff]
    %v46 = vld [vmem:[#allocation5 + $0x38] sm:$0xff]
    %v47 = vld [vmem:[#allocation5 + $0x40] sm:$0xff]
    %v48 = vld [vmem:[#allocation5 + $0x48] sm:$0xff]
    %v49 = vld [vmem:[#allocation5 + $0x50] sm:$0xff]
    %v50 = vld [vmem:[#allocation5 + $0x58] sm:$0xff]
    %v51 = vld [vmem:[#allocation5 + $0x60] sm:$0xff]
    %v52 = vld [vmem:[#allocation5 + $0x68] sm:$0xff]
    %v53 = vld [vmem:[#allocation5 + $0x70] sm:$0xff]
    %v54 = vld [vmem:[#allocation5 + $0x78] sm:$0xff]
    %v55 = vld [vmem:[#allocation5 + $0x80] sm:$0xff]
    %v56 = vld [vmem:[#allocation5 + $0x88] sm:$0xff]
    %v57 = vld [vmem:[#allocation5 + $0x90] sm:$0xff]
    %v58 = vld [vmem:[#allocation5 + $0x98] sm:$0xff]
    %v59 = vld [vmem:[#allocation5 + $0xa0] sm:$0xff]
    %v60 = vld [vmem:[#allocation5 + $0xa8] sm:$0xff]
    %v61 = vld [vmem:[#allocation5 + $0xb0] sm:$0xff]
    %v62 = vld [vmem:[#allocation5 + $0xb8] sm:$0xff]
    %v63 = vld [vmem:[#allocation5 + $0xc0] sm:$0xff]
    %v64 = vld [vmem:[#allocation5 + $0xc8] sm:$0xff]
    %v65 = vld [vmem:[#allocation5 + $0xd0] sm:$0xff]
    %v66 = vld [vmem:[#allocation5 + $0xd8] sm:$0xff]
    %v67 = vld [vmem:[#allocation5 + $0xe0] sm:$0xff]
    %v68 = vld [vmem:[#allocation5 + $0xe8] sm:$0xff]
    %v69 = vld [vmem:[#allocation5 + $0xf0] sm:$0xff]
    %v70 = vld [vmem:[#allocation5 + $0xf8] sm:$0xff]
    %v71 = vld [vmem:[#allocation5 + $0x100] sm:$0xff]
    %v72 = vld [vmem:[#allocation5 + $0x108] sm:$0xff]
    %v73 = vld [vmem:[#allocation5 + $0x110] sm:$0xff]
    %v74 = vld [vmem:[#allocation5 + $0x118] sm:$0xff]
    %v75 = vld [vmem:[#allocation5 + $0x120] sm:$0xff]
    %v76 = vld [vmem:[#allocation5 + $0x128] sm:$0xff]
    %v77 = vld [vmem:[#allocation5 + $0x130] sm:$0xff]
    %v78 = vld [vmem:[#allocation5 + $0x138] sm:$0xff]
    %v79 = vld [vmem:[#allocation5 + $0x140] sm:$0xff]
    %v80 = vld [vmem:[#allocation5 + $0x148] sm:$0xff]
    %v81 = vld [vmem:[#allocation5 + $0x150] sm:$0xff]
    %v82 = vld [vmem:[#allocation5 + $0x158] sm:$0xff]
    %v83 = vld [vmem:[#allocation5 + $0x160] sm:$0xff]
    %v84 = vld [vmem:[#allocation5 + $0x168] sm:$0xff]
    %v85 = vld [vmem:[#allocation5 + $0x170] sm:$0xff]
    %v86 = vld [vmem:[#allocation5 + $0x178] sm:$0xff]
    %87 = vmatprep.subr.mxu0 %v40
    %88 = vmatpush1.msra.mxu0 %v39
    %89 = vmatprep.subr.mxu0 %v43
    %90 = vmatpush1.msra.mxu0 %v42
    %91 = vmatprep.subr.mxu0 %v46
    %92 = vmatpush1.msra.mxu0 %v45
    %93 = vmatprep.subr.mxu0 %v49
    %94 = vmatpush1.msra.mxu0 %v48
    %95 = vmatprep.subr.mxu0 %v52
    %96 = vmatpush1.msra.mxu0 %v51
    %97 = vmatprep.subr.mxu0 %v55
    %98 = vmatpush1.msra.mxu0 %v54
    %99 = vmatprep.subr.mxu0 %v58
    %100 = vmatpush1.msra.mxu0 %v57
    %101 = vmatprep.subr.mxu0 %v61
    %102 = vmatpush1.msra.mxu0 %v60
    %103 = vmatprep.subr.mxu0 %v64
    %104 = vmatpush1.msra.mxu0 %v63
    %105 = vmatprep.subr.mxu0 %v67
    %106 = vmatpush1.msra.mxu0 %v66
    %107 = vmatprep.subr.mxu0 %v70
    %108 = vmatpush1.msra.mxu0 %v69
    %109 = vmatprep.subr.mxu0 %v73
    %110 = vmatpush1.msra.mxu0 %v72
    %111 = vmatprep.subr.mxu0 %v76
    %112 = vmatpush1.msra.mxu0 %v75
    %113 = vmatprep.subr.mxu0 %v79
    %114 = vmatpush1.msra.mxu0 %v78
    %115 = vmatprep.subr.mxu0 %v82
    %116 = vmatpush1.msra.mxu0 %v81
    %117 = vmatprep.subr.mxu0 %v85
    %118 = vmatpush1.msra.mxu0 %v84
    %119 = vmatprep.subr.mxu0 0.0
    %120 = vmatpush1.msra.mxu0 0.0
    %121 = vmatprep.subr.mxu0 0.0
    %122 = vmatpush1.msra.mxu0 0.0
    %123 = vmatprep.subr.mxu0 0.0
    %124 = vmatpush1.msra.mxu0 0.0
    %125 = vmatprep.subr.mxu0 0.0
    %126 = vmatpush1.msra.mxu0 0.0
    %127 = vmatprep.subr.mxu0 0.0
    %128 = vmatpush1.msra.mxu0 0.0
    %129 = vmatprep.subr.mxu0 0.0
    %130 = vmatpush1.msra.mxu0 0.0
    %131 = vmatprep.subr.mxu0 0.0
    %132 = vmatpush1.msra.mxu0 0.0
    %133 = vmatprep.subr.mxu0 0.0
    %134 = vmatpush1.msra.mxu0 0.0
    %135 = vmatprep.subr.mxu0 0.0
    %136 = vmatpush1.msra.mxu0 0.0
    %137 = vmatprep.subr.mxu0 0.0
    %138 = vmatpush1.msra.mxu0 0.0
    %139 = vmatprep.subr.mxu0 0.0
    %140 = vmatpush1.msra.mxu0 0.0
    %141 = vmatprep.subr.mxu0 0.0
    %142 = vmatpush1.msra.mxu0 0.0
    %143 = vmatprep.subr.mxu0 0.0
    %144 = vmatpush1.msra.mxu0 0.0
    %145 = vmatprep.subr.mxu0 0.0
    %146 = vmatpush1.msra.mxu0 0.0
    %147 = vmatprep.subr.mxu0 0.0
    %148 = vmatpush1.msra.mxu0 0.0
    %149 = vmatprep.subr.mxu0 0.0
    %150 = vmatpush1.msra.mxu0 0.0
    %151 = vmatprep.mubr.f32.mxu0 0.0
    %152 = vmatmul.mubr.f32.gmra.mrb[0].mxu0 %v38
    %v153 = vpop.f32.mrb[0].mxu0
    %v154 = vadd.f32 0.0, %v153
    %v155 = vpop.f32.mrb[0].mxu0
    %v156 = vadd.f32 0.0, %v155
    %157 = vdwg.mxu0
    %158 = vmatprep.subr.mxu0 0.0
    %159 = vmatpush1.msra.mxu0 %v41
    %160 = vmatprep.subr.mxu0 0.0
    %161 = vmatpush1.msra.mxu0 %v44
    %162 = vmatprep.subr.mxu0 0.0
    %163 = vmatpush1.msra.mxu0 %v47
    %164 = vmatprep.subr.mxu0 0.0
    %165 = vmatpush1.msra.mxu0 %v50
    %166 = vmatprep.subr.mxu0 0.0
    %167 = vmatpush1.msra.mxu0 %v53
    %168 = vmatprep.subr.mxu0 0.0
    %169 = vmatpush1.msra.mxu0 %v56
    %170 = vmatprep.subr.mxu0 0.0
    %171 = vmatpush1.msra.mxu0 %v59
    %172 = vmatprep.subr.mxu0 0.0
    %173 = vmatpush1.msra.mxu0 %v62
    %174 = vmatprep.subr.mxu0 0.0
    %175 = vmatpush1.msra.mxu0 %v65
    %176 = vmatprep.subr.mxu0 0.0
    %177 = vmatpush1.msra.mxu0 %v68
    %178 = vmatprep.subr.mxu0 0.0
    %179 = vmatpush1.msra.mxu0 %v71
    %180 = vmatprep.subr.mxu0 0.0
    %181 = vmatpush1.msra.mxu0 %v74
    %182 = vmatprep.subr.mxu0 0.0
    %183 = vmatpush1.msra.mxu0 %v77
    %184 = vmatprep.subr.mxu0 0.0
    %185 = vmatpush1.msra.mxu0 %v80
    %186 = vmatprep.subr.mxu0 0.0
    %187 = vmatpush1.msra.mxu0 %v83
    %188 = vmatprep.subr.mxu0 0.0
    %189 = vmatpush1.msra.mxu0 %v86
    %190 = vmatprep.subr.mxu0 0.0
    %191 = vmatpush1.msra.mxu0 0.0
    %192 = vmatprep.subr.mxu0 0.0
    %193 = vmatpush1.msra.mxu0 0.0
    %194 = vmatprep.subr.mxu0 0.0
    %195 = vmatpush1.msra.mxu0 0.0
    %196 = vmatprep.subr.mxu0 0.0
    %197 = vmatpush1.msra.mxu0 0.0
    %198 = vmatprep.subr.mxu0 0.0
    %199 = vmatpush1.msra.mxu0 0.0
    %200 = vmatprep.subr.mxu0 0.0
    %201 = vmatpush1.msra.mxu0 0.0
    %202 = vmatprep.subr.mxu0 0.0
    %203 = vmatpush1.msra.mxu0 0.0
    %204 = vmatprep.subr.mxu0 0.0
    %205 = vmatpush1.msra.mxu0 0.0
    %206 = vmatprep.subr.mxu0 0.0
    %207 = vmatpush1.msra.mxu0 0.0
    %208 = vmatprep.subr.mxu0 0.0
    %209 = vmatpush1.msra.mxu0 0.0
    %210 = vmatprep.subr.mxu0 0.0
    %211 = vmatpush1.msra.mxu0 0.0
    %212 = vmatprep.subr.mxu0 0.0
    %213 = vmatpush1.msra.mxu0 0.0
    %214 = vmatprep.subr.mxu0 0.0
    %215 = vmatpush1.msra.mxu0 0.0
    %216 = vmatprep.subr.mxu0 0.0
    %217 = vmatpush1.msra.mxu0 0.0
    %218 = vmatprep.subr.mxu0 0.0
    %219 = vmatpush1.msra.mxu0 0.0
    %220 = vmatprep.subr.mxu0 0.0
    %221 = vmatpush1.msra.mxu0 0.0
    %222 = vmatprep.mubr.f32.mxu0 0.0
    %223 = vmatmul.mubr.f32.gmra.mrb[0].mxu0 %v38
    %v224 = vpop.f32.mrb[0].mxu0
    %v225 = vadd.f32 0.0, %v224
    %v226 = vpop.f32.mrb[0].mxu0
    %227 = vdwg.mxu0
    %v228 = vpack.c.bf16 %v154, %v154
    %v229 = vpack.c.bf16 %v156, %v156
    %v230 = vpack.c.bf16 %v225, %v225
    %v234 = vunpack.c.l.b16 %v228
    %v235 = vunpack.c.l.b16 %v229
    %v236 = vunpack.c.l.b16 %v230
    %v237 = vpack.c.b16 %v235, %v234
    %v238 = vpack.c.b16 %v236, %v236
    %241 = vst [vmem:[#allocation7] sm:$0xff] %v237
    %242 = vst [vmem:[#allocation7 + $0x8] sm:$0xf] %v238
    // Predicated region
    $region18: #{tpu_custom_call.1} parent=1 // pred_check
      _
    $region19: #{tpu_custom_call.1} parent=1 // pred_check_branch
      %244 = sbr.rel (0) target = $region21
    $region20: #{tpu_custom_call.1} parent=1 // pred_region
      %s246 = ssub.s32 192, 192
      %247 = vsyncadd [#allocation4], %s246
      %s249 = sshll.u32 [#allocation7], 4
      %s250 = int_to_ptr.vmem [resolvable:$true] %s249
      %252 = dma.vmem_to_hbm [thread:$0]  %s250, 192, %s2, [#allocation4]
    $region21: #{tpu_custom_call.1} parent=1 // pred_fallthru
      _
    // Predicated region
    $region22: #{tpu_custom_call.1} parent=1 // pred_check
      _
    $region23: #{tpu_custom_call.1} parent=1 // pred_check_branch
      %254 = sbr.rel (0) target = $region25
    $region24: #{tpu_custom_call.1} parent=1 // pred_region
      %255 = dma.done [#allocation4], 192
    $region25: #{tpu_custom_call.1} parent=1 // pred_fallthru
      _
    %256 = vsyncpa [#allocation3], 1
    %257 = vsyncpa [#allocation6], 1
    %258 = vsyncpa [#allocation4], 1

</llo_original>
